<compile_context>
chip_gen: v7x
topology: tpu7x:2x2x1
jax: 0.10.0
libtpu: 0.0.40
codegen_flags: <defaults>
</compile_context>

<pallas_src>
import functools

import jax
import jax.numpy as jnp
from jax import lax
from jax.experimental import pallas as pl
from jax.experimental.pallas import tpu as pltpu


_DEFAULT_VMEM_BUDGET = 8 * 1024 * 1024  # per-block budget; x4 for in/out double-buffering


def _mosaic_params(buffer_bytes, dims):
    limit = max(int(buffer_bytes) + (4 << 20), 16 << 20)
    return pltpu.CompilerParams(dimension_semantics=dims, vmem_limit_bytes=limit)


# --------------------------- single-pass fused kernel ---------------------------
def _se_fused_kernel(x_ref, w1a_ref, w2a_ref, w1m_ref, w2m_ref, o_ref, *, inv_s):
    x = x_ref[...]                                   # (Bt, C, S)
    xf = x.astype(jnp.float32)

    pooled_avg = jnp.sum(xf, axis=-1) * inv_s        # (Bt, C)  (constant reciprocal)
    pooled_max = jnp.max(xf, axis=-1)                # (Bt, C)

    def excite(p, w1, w2):
        # p: (Bt, C), w1: (Cr, C), w2: (C, Cr)  ->  (Bt, C)
        h = lax.dot_general(p, w1, (((1,), (1,)), ((), ())),
                            preferred_element_type=jnp.float32)
        h = jnp.maximum(h, 0.0)
        y = lax.dot_general(h, w2, (((1,), (1,)), ((), ())),
                            preferred_element_type=jnp.float32)
        return jax.nn.sigmoid(y)

    gate = (excite(pooled_avg, w1a_ref[...], w2a_ref[...])
            + excite(pooled_max, w1m_ref[...], w2m_ref[...]) + 1.0)   # (Bt, C)

    # scaled shortcut: x * (y_avg + y_max) + x
    o_ref[...] = (xf * gate[:, :, None]).astype(o_ref.dtype)


def _pick_bt(B, C, S, itemsize, budget):
    per_batch = C * S * itemsize
    bt = max(1, min(B, budget // (4 * per_batch)))
    # keep >= 2 grid steps when possible so both v7x TensorCores get work
    if B // bt < 2 and B > 1:
        bt = max(1, B // 2)
    while B % bt:
        bt -= 1
    return bt


def _single_pass(x_flat, w1a, w2a, w1m, w2m, budget):
    B, C, S = x_flat.shape
    Cr = w1a.shape[0]
    itemsize = x_flat.dtype.itemsize
    bt = _pick_bt(B, C, S, itemsize, budget)

    kernel = functools.partial(_se_fused_kernel, inv_s=1.0 / S)
    buf_bytes = 4 * bt * C * S * itemsize + 8 * (Cr * C + C * Cr) * 4

    return pl.pallas_call(
        kernel,
        out_shape=jax.ShapeDtypeStruct((B, C, S), x_flat.dtype),
        grid_spec=pltpu.PrefetchScalarGridSpec(
            num_scalar_prefetch=0,
            grid=(B // bt,),
            in_specs=[
                pl.BlockSpec((bt, C, S), lambda b: (b, 0, 0)),
                pl.BlockSpec((Cr, C), lambda b: (0, 0)),
                pl.BlockSpec((C, Cr), lambda b: (0, 0)),
                pl.BlockSpec((Cr, C), lambda b: (0, 0)),
                pl.BlockSpec((C, Cr), lambda b: (0, 0)),
            ],
            out_specs=pl.BlockSpec((bt, C, S), lambda b: (b, 0, 0)),
        ),
        input_output_aliases={0: 0},   # in-place when x is donatable; XLA copies otherwise
        compiler_params=_mosaic_params(buf_bytes, ("parallel",)),
    )(x_flat, w1a, w2a, w1m, w2m)


# --------------------------- two-pass fallback (large S) ---------------------------
def _pool_kernel(x_ref, sum_ref, max_ref):
    s = pl.program_id(0)
    xf = x_ref[...].astype(jnp.float32)      # (B, C, St)
    part_sum = jnp.sum(xf, axis=-1)          # (B, C)
    part_max = jnp.max(xf, axis=-1)          # (B, C)

    @pl.when(s == 0)
    def _():
        sum_ref[...] = part_sum
        max_ref[...] = part_max

    @pl.when(s != 0)
    def _():
        sum_ref[...] = sum_ref[...] + part_sum
        max_ref[...] = jnp.maximum(max_ref[...], part_max)


def _apply_gate_kernel(x_ref, gate_ref, o_ref):
    # x: (Rt, St), gate: (Rt, 1) broadcasts over lanes
    o_ref[...] = (x_ref[...].astype(jnp.float32) * gate_ref[...]).astype(o_ref.dtype)


def _largest_pool_tile(S, max_elems):
    if S <= max_elems:
        return S
    top = (max_elems // 128) * 128
    for st in range(top, 0, -128):
        if S % st == 0:             # exact tiling -> no ragged tail polluting sum/max
            return st
    return None


def _two_pass(x_flat, w1a, w2a, w1m, w2m, budget):
    B, C, S = x_flat.shape
    itemsize = x_flat.dtype.itemsize

    # ---- pass 1: global sum / max pooling over the spatial axis ----
    st = _largest_pool_tile(S, max(1, budget // (2 * B * C * itemsize)))
    if st is None:
        # No legal lane-dense exact tiling of S; the reduction is tiny traffic-wise,
        # let plain XLA do it.  # TODO(synk): masked Pallas pooling for ragged S.
        xf32 = x_flat.astype(jnp.float32)
        pooled_sum = jnp.sum(xf32, axis=-1)
        pooled_max = jnp.max(xf32, axis=-1)
    else:
        buf_bytes = 2 * B * C * st * itemsize + 4 * B * C * 4
        pooled_sum, pooled_max = pl.pallas_call(
            _pool_kernel,
            out_shape=(jax.ShapeDtypeStruct((B, C), jnp.float32),
                       jax.ShapeDtypeStruct((B, C), jnp.float32)),
            grid_spec=pltpu.PrefetchScalarGridSpec(
                num_scalar_prefetch=0,
                grid=(S // st,),
                in_specs=[pl.BlockSpec((B, C, st), lambda s: (0, 0, s))],
                out_specs=(pl.BlockSpec((B, C), lambda s: (0, 0)),
                           pl.BlockSpec((B, C), lambda s: (0, 0))),
            ),
            compiler_params=_mosaic_params(buf_bytes, ("arbitrary",)),
        )(x_flat)

    # ---- tiny excitation MLPs (negligible FLOPs) in plain XLA ----
    p_avg = pooled_sum * (1.0 / S)
    y_avg = jax.nn.sigmoid(jnp.maximum(p_avg @ w1a.T, 0.0) @ w2a.T)
    y_max = jax.nn.sigmoid(jnp.maximum(pooled_max @ w1m.T, 0.0) @ w2m.T)
    gate = (y_avg + y_max + 1.0).astype(jnp.float32)          # (B, C)

    # ---- pass 2: elementwise gate apply, lane-dense (rows, S) tiling ----
    rows = B * C
    x2d = x_flat.reshape(rows, S)
    gate2d = gate.reshape(rows, 1)
    if rows % 8 == 0:
        rt = min(rows, 1024)
        rt -= rt % 8
    else:
        rt = rows
    max_st = max(128, (budget // (4 * rt * itemsize)) // 128 * 128)
    st2 = S if S <= max_st else max_st

    buf_bytes = 4 * rt * st2 * itemsize + 2 * rt * 4
    out2d = pl.pallas_call(
        _apply_gate_kernel,
        out_shape=jax.ShapeDtypeStruct((rows, S), x_flat.dtype),
        grid_spec=pltpu.PrefetchScalarGridSpec(
            num_scalar_prefetch=0,
            grid=(pl.cdiv(rows, rt), pl.cdiv(S, st2)),
            in_specs=[pl.BlockSpec((rt, st2), lambda r, s: (r, s)),
                      pl.BlockSpec((rt, 1), lambda r, s: (r, 0))],
            out_specs=pl.BlockSpec((rt, st2), lambda r, s: (r, s)),
        ),
        input_output_aliases={0: 0},
        compiler_params=_mosaic_params(buf_bytes, ("parallel", "parallel")),
    )(x2d, gate2d)
    return out2d.reshape(B, C, S)


# --------------------------------- public wrapper ---------------------------------
@functools.partial(jax.jit, static_argnames=("vmem_budget_bytes",))
def scaled_se_layer(x, w1a, w2a, w1m, w2m, *, vmem_budget_bytes=_DEFAULT_VMEM_BUDGET):
    """x: (B, C, D, H, W). Weights in PyTorch nn.Linear shapes: w1*: (Cr, C), w2*: (C, Cr)."""
    B, C, D, H, W = x.shape
    S = D * H * W
    x_flat = x.reshape(B, C, S)
    itemsize = x_flat.dtype.itemsize

    # Single fused kernel when one (1, C, S) block (double-buffered in + out) fits the
    # budget; otherwise split into pooling pass + gate-apply pass (bounds VMEM
    # independently of D*H*W — essential on v7x's 64 MiB VMEM).
    if 4 * C * S * itemsize <= vmem_budget_bytes:
        out_flat = _single_pass(x_flat, w1a, w2a, w1m, w2m, vmem_budget_bytes)
    else:
        out_flat = _two_pass(x_flat, w1a, w2a, w1m, w2m, vmem_budget_bytes)
    return out_flat.reshape(B, C, D, H, W)


def _reference(x, w1a, w2a, w1m, w2m):
    # Plain-JAX reference mirroring the PyTorch forward.
    B, C = x.shape[:2]
    xf = x.reshape(B, C, -1)
    p_avg = jnp.mean(xf, axis=-1)            # (B, C)
    p_max = jnp.max(xf, axis=-1)             # (B, C)
    y_avg = jax.nn.sigmoid(jnp.maximum(p_avg @ w1a.T, 0.0) @ w2a.T)
    y_max = jax.nn.sigmoid(jnp.maximum(p_max @ w1m.T, 0.0) @ w2m.T)
    y = (y_avg + y_max).reshape(B, C, 1, 1, 1)
    return x * y + x


if __name__ == "__main__":
    B, C, D, H, W = 2, 16, 4, 8, 8
    reduction = 8
    Cr = C // reduction

    key = jax.random.PRNGKey(0)
    kx, k1, k2, k3, k4 = jax.random.split(key, 5)

    x = jax.random.normal(kx, (B, C, D, H, W), dtype=jnp.float32)
    w1a = jax.random.normal(k1, (Cr, C), dtype=jnp.float32) * 0.2
    w2a = jax.random.normal(k2, (C, Cr), dtype=jnp.float32) * 0.2
    w1m = jax.random.normal(k3, (Cr, C), dtype=jnp.float32) * 0.2
    w2m = jax.random.normal(k4, (C, Cr), dtype=jnp.float32) * 0.2

    ref = _reference(x, w1a, w2a, w1m, w2m)

    # Default path: single fused kernel, batched blocks, aliased output.
    out = jax.block_until_ready(scaled_se_layer(x, w1a, w2a, w1m, w2m))
    assert jnp.allclose(out, ref, atol=1e-5, rtol=1e-5), "fused kernel mismatch"

    # Large-spatial-volume fallback: force the two-pass (pool + apply) path with a
    # tiny VMEM budget so that code path is also compiled and verified.
    out2 = jax.block_until_ready(
        scaled_se_layer(x, w1a, w2a, w1m, w2m, vmem_budget_bytes=32 * 1024))
    assert jnp.allclose(out2, ref, atol=1e-5, rtol=1e-5), "two-pass kernel mismatch"

    print("KERNEL_OK")
</pallas_src>

<mosaic_0001>
module attributes {stable_mosaic.version = 11 : i64} {
  func.func @_se_fused_kernel(%arg0: i32, %arg1: memref<1x16x256xf32, #tpu.memory_space<vmem>>, %arg2: memref<2x16xf32, #tpu.memory_space<vmem>>, %arg3: memref<16x2xf32, #tpu.memory_space<vmem>>, %arg4: memref<2x16xf32, #tpu.memory_space<vmem>>, %arg5: memref<16x2xf32, #tpu.memory_space<vmem>>, %arg6: memref<1x16x256xf32, #tpu.memory_space<vmem>>) attributes {dimension_semantics = [#tpu.dimension_semantics<parallel>], iteration_bounds = array<i64: 2>, scalar_prefetch = 0 : i64, scratch_operands = 0 : i64, tpu.core_type = #tpu.core_type<tc>, window_params = [{transform_indices = @transform_0, window_bounds = array<i64: 1, 16, 256>}, {pipeline_mode = #tpu.pipeline_mode<synchronous>, transform_indices = @transform_1, window_bounds = array<i64: 2, 16>}, {pipeline_mode = #tpu.pipeline_mode<synchronous>, transform_indices = @transform_2, window_bounds = array<i64: 16, 2>}, {pipeline_mode = #tpu.pipeline_mode<synchronous>, transform_indices = @transform_3, window_bounds = array<i64: 2, 16>}, {pipeline_mode = #tpu.pipeline_mode<synchronous>, transform_indices = @transform_4, window_bounds = array<i64: 16, 2>}, {transform_indices = @transform_5, window_bounds = array<i64: 1, 16, 256>}]} {
    %c0 = arith.constant 0 : index
    %c0_0 = arith.constant 0 : index
    %c0_1 = arith.constant 0 : index
    %0 = vector.load %arg1[%c0, %c0_0, %c0_1] : memref<1x16x256xf32, #tpu.memory_space<vmem>>, vector<1x16x256xf32>
    %cst = arith.constant dense<0.000000e+00> : vector<1x16xf32>
    %1 = vector.multi_reduction <add>, %0, %cst [2] : vector<1x16x256xf32> to vector<1x16xf32>
    %cst_2 = arith.constant 3.906250e-03 : f32
    %2 = vector.broadcast %cst_2 : f32 to vector<1x16xf32>
    %3 = arith.mulf %1, %2 : vector<1x16xf32>
    %cst_3 = arith.constant dense<0xFF800000> : vector<1x16xf32>
    %4 = vector.multi_reduction <maximumf>, %0, %cst_3 [2] : vector<1x16x256xf32> to vector<1x16xf32>
    %c0_4 = arith.constant 0 : index
    %c0_5 = arith.constant 0 : index
    %5 = vector.load %arg2[%c0_4, %c0_5] : memref<2x16xf32, #tpu.memory_space<vmem>>, vector<2x16xf32>
    %c0_6 = arith.constant 0 : index
    %c0_7 = arith.constant 0 : index
    %6 = vector.load %arg3[%c0_6, %c0_7] : memref<16x2xf32, #tpu.memory_space<vmem>>, vector<16x2xf32>
    %cst_8 = arith.constant dense<0.000000e+00> : vector<1x2xf32>
    %7 = tpu.matmul %3, %5, %cst_8 {dimension_numbers = #tpu.dot_dimension_numbers<[1], [1], [0], [0], [0, 0, 1, 0], [], []>} : vector<1x16xf32>, vector<2x16xf32>, vector<1x2xf32> -> vector<1x2xf32>
    %cst_9 = arith.constant 0.000000e+00 : f32
    %8 = vector.broadcast %cst_9 : f32 to vector<1x2xf32>
    %9 = arith.maximumf %7, %8 : vector<1x2xf32>
    %cst_10 = arith.constant dense<0.000000e+00> : vector<1x16xf32>
    %10 = tpu.matmul %9, %6, %cst_10 {dimension_numbers = #tpu.dot_dimension_numbers<[1], [1], [0], [0], [0, 0, 1, 0], [], []>} : vector<1x2xf32>, vector<16x2xf32>, vector<1x16xf32> -> vector<1x16xf32>
    %11 = arith.negf %10 : vector<1x16xf32>
    %12 = math.exp %11 : vector<1x16xf32>
    %cst_11 = arith.constant 1.000000e+00 : f32
    %13 = vector.broadcast %cst_11 : f32 to vector<1x16xf32>
    %14 = arith.addf %13, %12 : vector<1x16xf32>
    %15 = arith.divf %13, %14 : vector<1x16xf32>
    %c0_12 = arith.constant 0 : index
    %c0_13 = arith.constant 0 : index
    %16 = vector.load %arg4[%c0_12, %c0_13] : memref<2x16xf32, #tpu.memory_space<vmem>>, vector<2x16xf32>
    %c0_14 = arith.constant 0 : index
    %c0_15 = arith.constant 0 : index
    %17 = vector.load %arg5[%c0_14, %c0_15] : memref<16x2xf32, #tpu.memory_space<vmem>>, vector<16x2xf32>
    %cst_16 = arith.constant dense<0.000000e+00> : vector<1x2xf32>
    %18 = tpu.matmul %4, %16, %cst_16 {dimension_numbers = #tpu.dot_dimension_numbers<[1], [1], [0], [0], [0, 0, 1, 0], [], []>} : vector<1x16xf32>, vector<2x16xf32>, vector<1x2xf32> -> vector<1x2xf32>
    %cst_17 = arith.constant 0.000000e+00 : f32
    %19 = vector.broadcast %cst_17 : f32 to vector<1x2xf32>
    %20 = arith.maximumf %18, %19 : vector<1x2xf32>
    %cst_18 = arith.constant dense<0.000000e+00> : vector<1x16xf32>
    %21 = tpu.matmul %20, %17, %cst_18 {dimension_numbers = #tpu.dot_dimension_numbers<[1], [1], [0], [0], [0, 0, 1, 0], [], []>} : vector<1x2xf32>, vector<16x2xf32>, vector<1x16xf32> -> vector<1x16xf32>
    %22 = arith.negf %21 : vector<1x16xf32>
    %23 = math.exp %22 : vector<1x16xf32>
    %cst_19 = arith.constant 1.000000e+00 : f32
    %24 = vector.broadcast %cst_19 : f32 to vector<1x16xf32>
    %25 = arith.addf %24, %23 : vector<1x16xf32>
    %26 = arith.divf %24, %25 : vector<1x16xf32>
    %27 = arith.addf %15, %26 : vector<1x16xf32>
    %cst_20 = arith.constant 1.000000e+00 : f32
    %28 = vector.broadcast %cst_20 : f32 to vector<1x16xf32>
    %29 = arith.addf %27, %28 : vector<1x16xf32>
    %30 = vector.shape_cast %29 : vector<1x16xf32> to vector<1x16x1xf32>
    %31 = vector.broadcast %30 : vector<1x16x1xf32> to vector<1x16x256xf32>
    %32 = arith.mulf %0, %31 : vector<1x16x256xf32>
    %c0_21 = arith.constant 0 : index
    %c0_22 = arith.constant 0 : index
    %c0_23 = arith.constant 0 : index
    %33 = vector.load %arg6[%c0_21, %c0_22, %c0_23] : memref<1x16x256xf32, #tpu.memory_space<vmem>>, vector<1x16x256xf32>
    tpu.vector_store %arg6[%c0_21, %c0_22, %c0_23], %32 {strides = array<i32>} : memref<1x16x256xf32, #tpu.memory_space<vmem>>, vector<1x16x256xf32>,
    return
  }
  func.func @transform_0(%arg0: i32) -> (i32, i32, i32) {
    %c0_i32 = arith.constant 0 : i32
    %c0_i32_0 = arith.constant 0 : i32
    %c0_i32_1 = arith.constant 0 : i32
    return %arg0, %c0_i32, %c0_i32_0 : i32, i32, i32
  }
  func.func @transform_1(%arg0: i32) -> (i32, i32) {
    %c0_i32 = arith.constant 0 : i32
    %c0_i32_0 = arith.constant 0 : i32
    %c0_i32_1 = arith.constant 0 : i32
    return %c0_i32, %c0_i32_0 : i32, i32
  }
  func.func @transform_2(%arg0: i32) -> (i32, i32) {
    %c0_i32 = arith.constant 0 : i32
    %c0_i32_0 = arith.constant 0 : i32
    %c0_i32_1 = arith.constant 0 : i32
    return %c0_i32, %c0_i32_0 : i32, i32
  }
  func.func @transform_3(%arg0: i32) -> (i32, i32) {
    %c0_i32 = arith.constant 0 : i32
    %c0_i32_0 = arith.constant 0 : i32
    %c0_i32_1 = arith.constant 0 : i32
    return %c0_i32, %c0_i32_0 : i32, i32
  }
  func.func @transform_4(%arg0: i32) -> (i32, i32) {
    %c0_i32 = arith.constant 0 : i32
    %c0_i32_0 = arith.constant 0 : i32
    %c0_i32_1 = arith.constant 0 : i32
    return %c0_i32, %c0_i32_0 : i32, i32
  }
  func.func @transform_5(%arg0: i32) -> (i32, i32, i32) {
    %c0_i32 = arith.constant 0 : i32
    %c0_i32_0 = arith.constant 0 : i32
    %c0_i32_1 = arith.constant 0 : i32
    return %arg0, %c0_i32, %c0_i32_0 : i32, i32, i32
  }
}

</mosaic_0001>

<llo_original>
// kernel: scaled_se_layer.1
$region0: #{scaled_se_layer.1}
  #allocation0 [shape = 'u32[]', space=smem, size = 0x4, offset = 0x4, fixed_abs, tag = 'smem constant byte address 0x4 - core index']
  #allocation1 [shape = 'u32[144,128]{1,0:T(1,128)}', space=vmem, size = 0x12000, scoped, tag = 'internal scratch']
  %s0 = inlined_call_operand.vmem [shape: f32[2,16,256], index: 0, kind: input, shape index: {}, may-alias: {0,5}]
  %s1 = inlined_call_operand.vmem [shape: f32[2,16], index: 1, kind: input, shape index: {}]
  %s2 = inlined_call_operand.vmem [shape: f32[16,2], index: 2, kind: input, shape index: {}]
  %s3 = inlined_call_operand.vmem [shape: f32[2,16], index: 3, kind: input, shape index: {}]
  %s4 = inlined_call_operand.vmem [shape: f32[16,2], index: 4, kind: input, shape index: {}]
  %s5 = inlined_call_operand.vmem [shape: f32[2,16,256], index: 5, kind: output, shape index: {}, may-alias: {0,5}]
  %s6 = sld [smem:[#allocation0]]
  $region53: #{scaled_se_layer.1} parent=0
    _
  %s8 = ssub.s32 1, %s6
  %s9 = scalar_select 0, %s8, %s6
  loop: start=0, step=1, limit=4
  $region2: #{scaled_se_layer.1} parent=0 // loop_pre_header
    _
  $region3: #{scaled_se_layer.1} parent=0 // loop_header
    %s11 = sphi 0, %s15
    %p12 = scmp.ge.s32.totalorder %s11, 4
    %s21 = sphi 0, %s23
    %s24 = sphi 0, %s21
    %s25 = sphi 0, %s24
    %s41 = sphi 0, %s25
    %s45 = sphi 0, %s45
    %s47 = sphi 0, %s45
    %s48 = sphi 0, %s47
    %s62 = sphi 0, %s48
    %s66 = sphi 0, %s66
    %s68 = sphi 0, %s66
    %s69 = sphi 0, %s68
    %s83 = sphi 0, %s69
    %s87 = sphi 0, %s87
    %s89 = sphi 0, %s87
    %s90 = sphi 0, %s89
    %s104 = sphi 0, %s90
    %s108 = sphi 0, %s108
    %s110 = sphi 0, %s108
    %s111 = sphi 0, %s110
    %s125 = sphi 0, %s111
    %s131 = sphi 0, %s133
    %s134 = sphi 0, %s131
    %s135 = sphi 0, %s134
    %s151 = sphi 0, %s135
  $region4: #{scaled_se_layer.1} parent=0 // loop_header_branch
    %14 = sbr.rel (%p12) target = $region8
  $region5: #{scaled_se_layer.1} parent=0 // loop_body
    %s16 = ssub.s32 %s11, 1
    %s17 = ssub.s32 %s11, 2
    %s18 = sadd.s32 %s11, 1
    %s19 = ssub.s32 %s11, %s18
    %p20 = scmp.eq.s32.totalorder %s19, 0
    %s22 = sadd.s32 %s21, 1
    %s23 = scalar_select %p20, %s21, %s22
    %p26 = pneg %p20
    %p27 = scmp.eq.s32.totalorder %s11, 1
    %p28 = por %p26, %p27
    %p29 = scmp.ne.s32.totalorder %s21, %s24
    %p30 = scmp.eq.s32.totalorder %s11, 0
    %p31 = por %p29, %p30
    %p32 = scmp.ne.s32.totalorder %s21, %s24
    %p33 = scmp.eq.s32.totalorder %s16, 1
    %p34 = por %p32, %p33
    %p35 = scmp.ne.s32.totalorder %s24, %s25
    %p36 = scmp.eq.s32.totalorder %s16, 0
    %p37 = por %p35, %p36
    %p38 = scmp.ne.s32.totalorder %s24, %s25
    %p39 = scmp.eq.s32.totalorder %s17, 1
    %p40 = por %p38, %p39
    %p42 = scmp.ne.s32.totalorder %s25, %s41
    %p43 = scmp.eq.s32.totalorder %s17, 0
    %p44 = por %p42, %p43
    %s46 = sadd.s32 %s45, 1
    %p49 = scmp.eq.s32.totalorder %s11, 1
    %p50 = scmp.ne.s32.totalorder %s45, %s47
    %p51 = scmp.eq.s32.totalorder %s11, 0
    %p52 = por %p50, %p51
    %p53 = scmp.ne.s32.totalorder %s45, %s47
    %p54 = scmp.eq.s32.totalorder %s16, 1
    %p55 = por %p53, %p54
    %p56 = scmp.ne.s32.totalorder %s47, %s48
    %p57 = scmp.eq.s32.totalorder %s16, 0
    %p58 = por %p56, %p57
    %p59 = scmp.ne.s32.totalorder %s47, %s48
    %p60 = scmp.eq.s32.totalorder %s17, 1
    %p61 = por %p59, %p60
    %p63 = scmp.ne.s32.totalorder %s48, %s62
    %p64 = scmp.eq.s32.totalorder %s17, 0
    %p65 = por %p63, %p64
    %s67 = sadd.s32 %s66, 1
    %p70 = scmp.eq.s32.totalorder %s11, 1
    %p71 = scmp.ne.s32.totalorder %s66, %s68
    %p72 = scmp.eq.s32.totalorder %s11, 0
    %p73 = por %p71, %p72
    %p74 = scmp.ne.s32.totalorder %s66, %s68
    %p75 = scmp.eq.s32.totalorder %s16, 1
    %p76 = por %p74, %p75
    %p77 = scmp.ne.s32.totalorder %s68, %s69
    %p78 = scmp.eq.s32.totalorder %s16, 0
    %p79 = por %p77, %p78
    %p80 = scmp.ne.s32.totalorder %s68, %s69
    %p81 = scmp.eq.s32.totalorder %s17, 1
    %p82 = por %p80, %p81
    %p84 = scmp.ne.s32.totalorder %s69, %s83
    %p85 = scmp.eq.s32.totalorder %s17, 0
    %p86 = por %p84, %p85
    %s88 = sadd.s32 %s87, 1
    %p91 = scmp.eq.s32.totalorder %s11, 1
    %p92 = scmp.ne.s32.totalorder %s87, %s89
    %p93 = scmp.eq.s32.totalorder %s11, 0
    %p94 = por %p92, %p93
    %p95 = scmp.ne.s32.totalorder %s87, %s89
    %p96 = scmp.eq.s32.totalorder %s16, 1
    %p97 = por %p95, %p96
    %p98 = scmp.ne.s32.totalorder %s89, %s90
    %p99 = scmp.eq.s32.totalorder %s16, 0
    %p100 = por %p98, %p99
    %p101 = scmp.ne.s32.totalorder %s89, %s90
    %p102 = scmp.eq.s32.totalorder %s17, 1
    %p103 = por %p101, %p102
    %p105 = scmp.ne.s32.totalorder %s90, %s104
    %p106 = scmp.eq.s32.totalorder %s17, 0
    %p107 = por %p105, %p106
    %s109 = sadd.s32 %s108, 1
    %p112 = scmp.eq.s32.totalorder %s11, 1
    %p113 = scmp.ne.s32.totalorder %s108, %s110
    %p114 = scmp.eq.s32.totalorder %s11, 0
    %p115 = por %p113, %p114
    %p116 = scmp.ne.s32.totalorder %s108, %s110
    %p117 = scmp.eq.s32.totalorder %s16, 1
    %p118 = por %p116, %p117
    %p119 = scmp.ne.s32.totalorder %s110, %s111
    %p120 = scmp.eq.s32.totalorder %s16, 0
    %p121 = por %p119, %p120
    %p122 = scmp.ne.s32.totalorder %s110, %s111
    %p123 = scmp.eq.s32.totalorder %s17, 1
    %p124 = por %p122, %p123
    %p126 = scmp.ne.s32.totalorder %s111, %s125
    %p127 = scmp.eq.s32.totalorder %s17, 0
    %p128 = por %p126, %p127
    %s129 = ssub.s32 %s11, %s18
    %p130 = scmp.eq.s32.totalorder %s129, 0
    %s132 = sadd.s32 %s131, 1
    %s133 = scalar_select %p130, %s131, %s132
    %p136 = pneg %p130
    %p137 = scmp.eq.s32.totalorder %s11, 1
    %p138 = por %p136, %p137
    %p139 = scmp.ne.s32.totalorder %s131, %s134
    %p140 = scmp.eq.s32.totalorder %s11, 0
    %p141 = por %p139, %p140
    %p142 = scmp.ne.s32.totalorder %s131, %s134
    %p143 = scmp.eq.s32.totalorder %s16, 1
    %p144 = por %p142, %p143
    %p145 = scmp.ne.s32.totalorder %s134, %s135
    %p146 = scmp.eq.s32.totalorder %s16, 0
    %p147 = por %p145, %p146
    %p148 = scmp.ne.s32.totalorder %s134, %s135
    %p149 = scmp.eq.s32.totalorder %s17, 1
    %p150 = por %p148, %p149
    %p152 = scmp.ne.s32.totalorder %s135, %s151
    %p153 = scmp.eq.s32.totalorder %s17, 0
    %p154 = por %p152, %p153
    %p155 = scmp.le.s32.totalorder 1, %s11
    %p156 = scmp.lt.s32.totalorder %s11, 3
    %p157 = pnand %p155, %p156
    %p158 = pneg %p157
    // Predicated region
    $region9: #{scaled_se_layer.1} parent=5 // pred_check
      _
    $region10: #{scaled_se_layer.1} parent=5 // pred_check_branch
      %160 = sbr.rel (%p157) target = $region12
    $region11: #{scaled_se_layer.1} parent=5 // pred_region
      %s161 = ssub.s32 %s11, 1
      // Predicated region
      $region13: #{scaled_se_layer.1} parent=11 // pred_check
        %p162 = pneg %p58
      $region14: #{scaled_se_layer.1} parent=11 // pred_check_branch
        %164 = sbr.rel (%p162) target = $region16
      $region15: #{scaled_se_layer.1} parent=11 // pred_region
        _
      $region16: #{scaled_se_layer.1} parent=11 // pred_fallthru
        _
      // Predicated region
      $region17: #{scaled_se_layer.1} parent=11 // pred_check
        %p165 = pneg %p79
      $region18: #{scaled_se_layer.1} parent=11 // pred_check_branch
        %167 = sbr.rel (%p165) target = $region20
      $region19: #{scaled_se_layer.1} parent=11 // pred_region
        _
      $region20: #{scaled_se_layer.1} parent=11 // pred_fallthru
        _
      // Predicated region
      $region21: #{scaled_se_layer.1} parent=11 // pred_check
        %p168 = pneg %p100
      $region22: #{scaled_se_layer.1} parent=11 // pred_check_branch
        %170 = sbr.rel (%p168) target = $region24
      $region23: #{scaled_se_layer.1} parent=11 // pred_region
        _
      $region24: #{scaled_se_layer.1} parent=11 // pred_fallthru
        _
      // Predicated region
      $region25: #{scaled_se_layer.1} parent=11 // pred_check
        %p171 = pneg %p121
      $region26: #{scaled_se_layer.1} parent=11 // pred_check_branch
        %173 = sbr.rel (%p171) target = $region28
      $region27: #{scaled_se_layer.1} parent=11 // pred_region
        _
      $region28: #{scaled_se_layer.1} parent=11 // pred_fallthru
        _
    $region12: #{scaled_se_layer.1} parent=5 // pred_fallthru
      _
    %p174 = scmp.lt.s32.totalorder %s11, 2
    // Predicated region
    $region29: #{scaled_se_layer.1} parent=5 // pred_check
      %p175 = pneg %p174
    $region30: #{scaled_se_layer.1} parent=5 // pred_check_branch
      %177 = sbr.rel (%p175) target = $region32
    $region31: #{scaled_se_layer.1} parent=5 // pred_region
      // Predicated region
      $region33: #{scaled_se_layer.1} parent=31 // pred_check
        %p178 = pneg %p31
      $region34: #{scaled_se_layer.1} parent=31 // pred_check_branch
        %180 = sbr.rel (%p178) target = $region36
      $region35: #{scaled_se_layer.1} parent=31 // pred_region
        %p181 = scmp.lt.s32.totalorder %s11, 1
        %s182 = scalar_select %p181, %s11, 1
        %s183 = smul.addr %s182, 4
        %s184 = smul.addr %s183, 8
        %s185 = scalar_lea.vmem %s0, %s184
      $region36: #{scaled_se_layer.1} parent=31 // pred_fallthru
        _
    $region32: #{scaled_se_layer.1} parent=5 // pred_fallthru
      _
    %p186 = scmp.le.s32.totalorder 1, %s11
    %p187 = scmp.lt.s32.totalorder %s11, 3
    %p188 = pnand %p186, %p187
    %p189 = pneg %p188
    // Predicated region
    $region37: #{scaled_se_layer.1} parent=5 // pred_check
      _
    $region38: #{scaled_se_layer.1} parent=5 // pred_check_branch
      %191 = sbr.rel (%p188) target = $region40
    $region39: #{scaled_se_layer.1} parent=5 // pred_region
      %s192 = ssub.s32 %s11, 1
      %p193 = scmp.lt.s32.totalorder %s16, 1
      %s194 = scalar_select %p193, %s16, 1
      %s195 = smul.addr %s194, 4
      %s196 = smul.addr %s195, 8
      %s197 = scalar_lea.vmem %s0, %s196
      %p198 = pneg %p37
      %p199 = pneg %p34
      %p200 = pneg %p58
      %p201 = pneg %p55
      %p202 = pneg %p79
      %p203 = pneg %p76
      %p204 = pneg %p100
      %p205 = pneg %p97
      %p206 = pneg %p121
      %p207 = pneg %p118
      %p208 = pneg %p147
      %p209 = pneg %p144
      %p210 = scmp.lt.s32.totalorder %s16, 1
      %s211 = scalar_select %p210, %s16, 1
      %s212 = smul.addr %s211, 4
      %s213 = smul.addr %s212, 8
      %s214 = scalar_lea.vmem %s5, %s213
      %p215 = scmp.lt.s32.totalorder %s16, 1
      %s216 = scalar_select %p215, %s16, 1
      %s217 = smul.addr %s216, 4
      %s218 = smul.addr %s217, 8
      %s219 = scalar_lea.vmem %s0, %s218
      %p220 = scmp.lt.s32.totalorder %s16, 1
      %s221 = scalar_select %p220, %s16, 1
      %s222 = smul.addr %s221, 4
      %s223 = smul.addr %s222, 8
      %s224 = scalar_lea.vmem %s5, %s223
      %v225 = vld [vmem:[%s219] sm:$0xff]
      %v226 = vld [vmem:[%s219 + $0x8] sm:$0xff]
      %v227 = vld [vmem:[%s219 + $0x10] sm:$0xff]
      %v228 = vld [vmem:[%s219 + $0x18] sm:$0xff]
      %v229 = vadd.f32 %v225, %v226
      %230 = vadd.xlane.f32.xlu0 %v229
      %v231 = vpop.xlane.xlu0 %230
      %v232 = vadd.f32 %v227, %v228
      %233 = vadd.xlane.f32.xlu0 %v232
      %v234 = vpop.xlane.xlu0 %233
      %v235 = vmul.f32 %v231, 0.00390625
      %v236 = vmul.f32 %v234, 0.00390625
      %v237 = vmax.f32 %v225, %v226
      %238 = vmax.xlane.f32.xlu0 %v237
      %v239 = vpop.xlane.xlu0 %238
      %v240 = vmax.f32 %v227, %v228
      %241 = vmax.xlane.f32.xlu0 %v240
      %v242 = vpop.xlane.xlu0 %241
      %v243 = vld [vmem:[%s1] sm:$0x3]
      %v244 = vld [vmem:[%s2] sm:$0xff]
      %v245 = vld [vmem:[%s2 + $0x8] sm:$0xff]
      %v248 = vlaneseq
      %v249 = vand.u32 %v248, 127
      %v250 = vlaneseq
      %v251 = vshrl.u32 %v250, 7
      %v252 = vsub.s32 %v249, %v251
      %v253 = vrot.slane %v235, %v252
      %v254 = vadd.s32 %v249, 4294967288
      %v255 = vlaneseq
      %v256 = vshrl.u32 %v255, 7
      %v257 = vsub.s32 %v254, %v256
      %v258 = vrot.slane %v236, %v257
      %vm259 = vcmask 130112
      %v260 = vsel %vm259, %v258, %v253
      %vm261 = vcmask 130048
      %v262 = vsel %vm261, %v260, 0
      %v265 = vsel %vm261, %v243, 0
      %267 = vmatprep.subr.mxu0 0.0
      %268 = vmatpush1.xpose.msra.mxu0 %v265
      %269 = vmatprep.subr.mxu0 0.0
      %270 = vmatpush1.xpose.msra.mxu0 0.0
      %271 = vmatprep.subr.mxu0 0.0
      %272 = vmatpush1.xpose.msra.mxu0 0.0
      %273 = vmatprep.subr.mxu0 0.0
      %274 = vmatpush1.xpose.msra.mxu0 0.0
      %275 = vmatprep.subr.mxu0 0.0
      %276 = vmatpush1.xpose.msra.mxu0 0.0
      %277 = vmatprep.subr.mxu0 0.0
      %278 = vmatpush1.xpose.msra.mxu0 0.0
      %279 = vmatprep.subr.mxu0 0.0
      %280 = vmatpush1.xpose.msra.mxu0 0.0
      %281 = vmatprep.subr.mxu0 0.0
      %282 = vmatpush1.xpose.msra.mxu0 0.0
      %283 = vmatprep.subr.mxu0 0.0
      %284 = vmatpush1.xpose.msra.mxu0 0.0
      %285 = vmatprep.subr.mxu0 0.0
      %286 = vmatpush1.xpose.msra.mxu0 0.0
      %287 = vmatprep.subr.mxu0 0.0
      %288 = vmatpush1.xpose.msra.mxu0 0.0
      %289 = vmatprep.subr.mxu0 0.0
      %290 = vmatpush1.xpose.msra.mxu0 0.0
      %291 = vmatprep.subr.mxu0 0.0
      %292 = vmatpush1.xpose.msra.mxu0 0.0
      %293 = vmatprep.subr.mxu0 0.0
      %294 = vmatpush1.xpose.msra.mxu0 0.0
      %295 = vmatprep.subr.mxu0 0.0
      %296 = vmatpush1.xpose.msra.mxu0 0.0
      %297 = vmatprep.subr.mxu0 0.0
      %298 = vmatpush1.xpose.msra.mxu0 0.0
      %299 = vmatprep.subr.mxu0 0.0
      %300 = vmatpush1.xpose.msra.mxu0 0.0
      %301 = vmatprep.subr.mxu0 0.0
      %302 = vmatpush1.xpose.msra.mxu0 0.0
      %303 = vmatprep.subr.mxu0 0.0
      %304 = vmatpush1.xpose.msra.mxu0 0.0
      %305 = vmatprep.subr.mxu0 0.0
      %306 = vmatpush1.xpose.msra.mxu0 0.0
      %307 = vmatprep.subr.mxu0 0.0
      %308 = vmatpush1.xpose.msra.mxu0 0.0
      %309 = vmatprep.subr.mxu0 0.0
      %310 = vmatpush1.xpose.msra.mxu0 0.0
      %311 = vmatprep.subr.mxu0 0.0
      %312 = vmatpush1.xpose.msra.mxu0 0.0
      %313 = vmatprep.subr.mxu0 0.0
      %314 = vmatpush1.xpose.msra.mxu0 0.0
      %315 = vmatprep.subr.mxu0 0.0
      %316 = vmatpush1.xpose.msra.mxu0 0.0
      %317 = vmatprep.subr.mxu0 0.0
      %318 = vmatpush1.xpose.msra.mxu0 0.0
      %319 = vmatprep.subr.mxu0 0.0
      %320 = vmatpush1.xpose.msra.mxu0 0.0
      %321 = vmatprep.subr.mxu0 0.0
      %322 = vmatpush1.xpose.msra.mxu0 0.0
      %323 = vmatprep.subr.mxu0 0.0
      %324 = vmatpush1.xpose.msra.mxu0 0.0
      %325 = vmatprep.subr.mxu0 0.0
      %326 = vmatpush1.xpose.msra.mxu0 0.0
      %327 = vmatprep.subr.mxu0 0.0
      %328 = vmatpush1.xpose.msra.mxu0 0.0
      %329 = vmatprep.subr.mxu0 0.0
      %330 = vmatpush1.xpose.msra.mxu0 0.0
      %331 = vmatprep.mubr.f32.mxu0 0.0
      %332 = vmatmul.mubr.f32.gmra.mrb[0].mxu0 %v262
      %v333 = vpop.f32.mrb[0].mxu0
      %v334 = vadd.f32 0.0, %v333
      %v335 = vpop.f32.mrb[0].mxu0
      %336 = vdwg.mxu0
      %v337 = vmax.f32 %v334, 0.0
      %vm338 = vcmask 15360
      %v340 = vsel %vm338, %v337, 0
      %v343 = vsel %vm338, %v244, 0
      %v346 = vsel %vm338, %v245, 0
      %348 = vmatprep.subr.mxu0 0.0
      %349 = vmatpush1.xpose.msra.mxu0 %v343
      %350 = vmatprep.subr.mxu0 0.0
      %351 = vmatpush1.xpose.msra.mxu0 %v346
      %352 = vmatprep.subr.mxu0 0.0
      %353 = vmatpush1.xpose.msra.mxu0 0.0
      %354 = vmatprep.subr.mxu0 0.0
      %355 = vmatpush1.xpose.msra.mxu0 0.0
      %356 = vmatprep.subr.mxu0 0.0
      %357 = vmatpush1.xpose.msra.mxu0 0.0
      %358 = vmatprep.subr.mxu0 0.0
      %359 = vmatpush1.xpose.msra.mxu0 0.0
      %360 = vmatprep.subr.mxu0 0.0
      %361 = vmatpush1.xpose.msra.mxu0 0.0
      %362 = vmatprep.subr.mxu0 0.0
      %363 = vmatpush1.xpose.msra.mxu0 0.0
      %364 = vmatprep.subr.mxu0 0.0
      %365 = vmatpush1.xpose.msra.mxu0 0.0
      %366 = vmatprep.subr.mxu0 0.0
      %367 = vmatpush1.xpose.msra.mxu0 0.0
      %368 = vmatprep.subr.mxu0 0.0
      %369 = vmatpush1.xpose.msra.mxu0 0.0
      %370 = vmatprep.subr.mxu0 0.0
      %371 = vmatpush1.xpose.msra.mxu0 0.0
      %372 = vmatprep.subr.mxu0 0.0
      %373 = vmatpush1.xpose.msra.mxu0 0.0
      %374 = vmatprep.subr.mxu0 0.0
      %375 = vmatpush1.xpose.msra.mxu0 0.0
      %376 = vmatprep.subr.mxu0 0.0
      %377 = vmatpush1.xpose.msra.mxu0 0.0
      %378 = vmatprep.subr.mxu0 0.0
      %379 = vmatpush1.xpose.msra.mxu0 0.0
      %380 = vmatprep.subr.mxu0 0.0
      %381 = vmatpush1.xpose.msra.mxu0 0.0
      %382 = vmatprep.subr.mxu0 0.0
      %383 = vmatpush1.xpose.msra.mxu0 0.0
      %384 = vmatprep.subr.mxu0 0.0
      %385 = vmatpush1.xpose.msra.mxu0 0.0
      %386 = vmatprep.subr.mxu0 0.0
      %387 = vmatpush1.xpose.msra.mxu0 0.0
      %388 = vmatprep.subr.mxu0 0.0
      %389 = vmatpush1.xpose.msra.mxu0 0.0
      %390 = vmatprep.subr.mxu0 0.0
      %391 = vmatpush1.xpose.msra.mxu0 0.0
      %392 = vmatprep.subr.mxu0 0.0
      %393 = vmatpush1.xpose.msra.mxu0 0.0
      %394 = vmatprep.subr.mxu0 0.0
      %395 = vmatpush1.xpose.msra.mxu0 0.0
      %396 = vmatprep.subr.mxu0 0.0
      %397 = vmatpush1.xpose.msra.mxu0 0.0
      %398 = vmatprep.subr.mxu0 0.0
      %399 = vmatpush1.xpose.msra.mxu0 0.0
      %400 = vmatprep.subr.mxu0 0.0
      %401 = vmatpush1.xpose.msra.mxu0 0.0
      %402 = vmatprep.subr.mxu0 0.0
      %403 = vmatpush1.xpose.msra.mxu0 0.0
      %404 = vmatprep.subr.mxu0 0.0
      %405 = vmatpush1.xpose.msra.mxu0 0.0
      %406 = vmatprep.subr.mxu0 0.0
      %407 = vmatpush1.xpose.msra.mxu0 0.0
      %408 = vmatprep.subr.mxu0 0.0
      %409 = vmatpush1.xpose.msra.mxu0 0.0
      %410 = vmatprep.subr.mxu0 0.0
      %411 = vmatpush1.xpose.msra.mxu0 0.0
      %412 = vmatprep.mubr.f32.mxu0 0.0
      %413 = vmatmul.mubr.f32.gmra.mrb[0].mxu0 %v340
      %v414 = vpop.f32.mrb[0].mxu0
      %v415 = vadd.f32 0.0, %v414
      %v416 = vpop.f32.mrb[0].mxu0
      %417 = vdwg.mxu0
      %v418 = vxor.u32 %v415, 2147483648
      %v419 = vmul.f32 %v418, 1.442695
      %v420 = vpow.pop %v419
      %v421 = vadd.f32 %v420, 1.0
      %v422 = vrcp.pop %v421
      %v423 = vmul.f32 1.0, %v422
      %v424 = vld [vmem:[%s3] sm:$0x3]
      %v425 = vld [vmem:[%s4] sm:$0xff]
      %v426 = vld [vmem:[%s4 + $0x8] sm:$0xff]
      %v429 = vlaneseq
      %v430 = vshrl.u32 %v429, 7
      %v431 = vsub.s32 %v249, %v430
      %v432 = vrot.slane %v239, %v431
      %v433 = vlaneseq
      %v434 = vshrl.u32 %v433, 7
      %v435 = vsub.s32 %v254, %v434
      %v436 = vrot.slane %v242, %v435
      %v437 = vsel %vm259, %v436, %v432
      %v438 = vsel %vm261, %v437, 0
      %v441 = vsel %vm261, %v424, 0
      %443 = vmatprep.subr.mxu0 0.0
      %444 = vmatpush1.xpose.msra.mxu0 %v441
      %445 = vmatprep.subr.mxu0 0.0
      %446 = vmatpush1.xpose.msra.mxu0 0.0
      %447 = vmatprep.subr.mxu0 0.0
      %448 = vmatpush1.xpose.msra.mxu0 0.0
      %449 = vmatprep.subr.mxu0 0.0
      %450 = vmatpush1.xpose.msra.mxu0 0.0
      %451 = vmatprep.subr.mxu0 0.0
      %452 = vmatpush1.xpose.msra.mxu0 0.0
      %453 = vmatprep.subr.mxu0 0.0
      %454 = vmatpush1.xpose.msra.mxu0 0.0
      %455 = vmatprep.subr.mxu0 0.0
      %456 = vmatpush1.xpose.msra.mxu0 0.0
      %457 = vmatprep.subr.mxu0 0.0
      %458 = vmatpush1.xpose.msra.mxu0 0.0
      %459 = vmatprep.subr.mxu0 0.0
      %460 = vmatpush1.xpose.msra.mxu0 0.0
      %461 = vmatprep.subr.mxu0 0.0
      %462 = vmatpush1.xpose.msra.mxu0 0.0
      %463 = vmatprep.subr.mxu0 0.0
      %464 = vmatpush1.xpose.msra.mxu0 0.0
      %465 = vmatprep.subr.mxu0 0.0
      %466 = vmatpush1.xpose.msra.mxu0 0.0
      %467 = vmatprep.subr.mxu0 0.0
      %468 = vmatpush1.xpose.msra.mxu0 0.0
      %469 = vmatprep.subr.mxu0 0.0
      %470 = vmatpush1.xpose.msra.mxu0 0.0
      %471 = vmatprep.subr.mxu0 0.0
      %472 = vmatpush1.xpose.msra.mxu0 0.0
      %473 = vmatprep.subr.mxu0 0.0
      %474 = vmatpush1.xpose.msra.mxu0 0.0
      %475 = vmatprep.subr.mxu0 0.0
      %476 = vmatpush1.xpose.msra.mxu0 0.0
      %477 = vmatprep.subr.mxu0 0.0
      %478 = vmatpush1.xpose.msra.mxu0 0.0
      %479 = vmatprep.subr.mxu0 0.0
      %480 = vmatpush1.xpose.msra.mxu0 0.0
      %481 = vmatprep.subr.mxu0 0.0
      %482 = vmatpush1.xpose.msra.mxu0 0.0
      %483 = vmatprep.subr.mxu0 0.0
      %484 = vmatpush1.xpose.msra.mxu0 0.0
      %485 = vmatprep.subr.mxu0 0.0
      %486 = vmatpush1.xpose.msra.mxu0 0.0
      %487 = vmatprep.subr.mxu0 0.0
      %488 = vmatpush1.xpose.msra.mxu0 0.0
      %489 = vmatprep.subr.mxu0 0.0
      %490 = vmatpush1.xpose.msra.mxu0 0.0
      %491 = vmatprep.subr.mxu0 0.0
      %492 = vmatpush1.xpose.msra.mxu0 0.0
      %493 = vmatprep.subr.mxu0 0.0
      %494 = vmatpush1.xpose.msra.mxu0 0.0
      %495 = vmatprep.subr.mxu0 0.0
      %496 = vmatpush1.xpose.msra.mxu0 0.0
      %497 = vmatprep.subr.mxu0 0.0
      %498 = vmatpush1.xpose.msra.mxu0 0.0
      %499 = vmatprep.subr.mxu0 0.0
      %500 = vmatpush1.xpose.msra.mxu0 0.0
      %501 = vmatprep.subr.mxu0 0.0
      %502 = vmatpush1.xpose.msra.mxu0 0.0
      %503 = vmatprep.subr.mxu0 0.0
      %504 = vmatpush1.xpose.msra.mxu0 0.0
      %505 = vmatprep.subr.mxu0 0.0
      %506 = vmatpush1.xpose.msra.mxu0 0.0
      %507 = vmatprep.mubr.f32.mxu0 0.0
      %508 = vmatmul.mubr.f32.gmra.mrb[0].mxu0 %v438
      %v509 = vpop.f32.mrb[0].mxu0
      %v510 = vadd.f32 0.0, %v509
      %v511 = vpop.f32.mrb[0].mxu0
      %512 = vdwg.mxu0
      %v513 = vmax.f32 %v510, 0.0
      %v515 = vsel %vm338, %v513, 0
      %v518 = vsel %vm338, %v425, 0
      %v521 = vsel %vm338, %v426, 0
      %523 = vmatprep.subr.mxu0 0.0
      %524 = vmatpush1.xpose.msra.mxu0 %v518
      %525 = vmatprep.subr.mxu0 0.0
      %526 = vmatpush1.xpose.msra.mxu0 %v521
      %527 = vmatprep.subr.mxu0 0.0
      %528 = vmatpush1.xpose.msra.mxu0 0.0
      %529 = vmatprep.subr.mxu0 0.0
      %530 = vmatpush1.xpose.msra.mxu0 0.0
      %531 = vmatprep.subr.mxu0 0.0
      %532 = vmatpush1.xpose.msra.mxu0 0.0
      %533 = vmatprep.subr.mxu0 0.0
      %534 = vmatpush1.xpose.msra.mxu0 0.0
      %535 = vmatprep.subr.mxu0 0.0
      %536 = vmatpush1.xpose.msra.mxu0 0.0
      %537 = vmatprep.subr.mxu0 0.0
      %538 = vmatpush1.xpose.msra.mxu0 0.0
      %539 = vmatprep.subr.mxu0 0.0
      %540 = vmatpush1.xpose.msra.mxu0 0.0
      %541 = vmatprep.subr.mxu0 0.0
      %542 = vmatpush1.xpose.msra.mxu0 0.0
      %543 = vmatprep.subr.mxu0 0.0
      %544 = vmatpush1.xpose.msra.mxu0 0.0
      %545 = vmatprep.subr.mxu0 0.0
      %546 = vmatpush1.xpose.msra.mxu0 0.0
      %547 = vmatprep.subr.mxu0 0.0
      %548 = vmatpush1.xpose.msra.mxu0 0.0
      %549 = vmatprep.subr.mxu0 0.0
      %550 = vmatpush1.xpose.msra.mxu0 0.0
      %551 = vmatprep.subr.mxu0 0.0
      %552 = vmatpush1.xpose.msra.mxu0 0.0
      %553 = vmatprep.subr.mxu0 0.0
      %554 = vmatpush1.xpose.msra.mxu0 0.0
      %555 = vmatprep.subr.mxu0 0.0
      %556 = vmatpush1.xpose.msra.mxu0 0.0
      %557 = vmatprep.subr.mxu0 0.0
      %558 = vmatpush1.xpose.msra.mxu0 0.0
      %559 = vmatprep.subr.mxu0 0.0
      %560 = vmatpush1.xpose.msra.mxu0 0.0
      %561 = vmatprep.subr.mxu0 0.0
      %562 = vmatpush1.xpose.msra.mxu0 0.0
      %563 = vmatprep.subr.mxu0 0.0
      %564 = vmatpush1.xpose.msra.mxu0 0.0
      %565 = vmatprep.subr.mxu0 0.0
      %566 = vmatpush1.xpose.msra.mxu0 0.0
      %567 = vmatprep.subr.mxu0 0.0
      %568 = vmatpush1.xpose.msra.mxu0 0.0
      %569 = vmatprep.subr.mxu0 0.0
      %570 = vmatpush1.xpose.msra.mxu0 0.0
      %571 = vmatprep.subr.mxu0 0.0
      %572 = vmatpush1.xpose.msra.mxu0 0.0
      %573 = vmatprep.subr.mxu0 0.0
      %574 = vmatpush1.xpose.msra.mxu0 0.0
      %575 = vmatprep.subr.mxu0 0.0
      %576 = vmatpush1.xpose.msra.mxu0 0.0
      %577 = vmatprep.subr.mxu0 0.0
      %578 = vmatpush1.xpose.msra.mxu0 0.0
      %579 = vmatprep.subr.mxu0 0.0
      %580 = vmatpush1.xpose.msra.mxu0 0.0
      %581 = vmatprep.subr.mxu0 0.0
      %582 = vmatpush1.xpose.msra.mxu0 0.0
      %583 = vmatprep.subr.mxu0 0.0
      %584 = vmatpush1.xpose.msra.mxu0 0.0
      %585 = vmatprep.subr.mxu0 0.0
      %586 = vmatpush1.xpose.msra.mxu0 0.0
      %587 = vmatprep.mubr.f32.mxu0 0.0
      %588 = vmatmul.mubr.f32.gmra.mrb[0].mxu0 %v515
      %v589 = vpop.f32.mrb[0].mxu0
      %v590 = vadd.f32 0.0, %v589
      %v591 = vpop.f32.mrb[0].mxu0
      %592 = vdwg.mxu0
      %v593 = vxor.u32 %v590, 2147483648
      %v594 = vmul.f32 %v593, 1.442695
      %v595 = vpow.pop %v594
      %v596 = vadd.f32 %v595, 1.0
      %v597 = vrcp.pop %v596
      %v598 = vmul.f32 1.0, %v597
      %v599 = vadd.f32 %v423, %v598
      %v600 = vadd.f32 %v599, 1.0
      %v601 = vlaneseq
      %v602 = vshrl.u32 %v601, 7
      %v603 = vsub.s32 0, %v602
      %v604 = vrot.slane %v600, %v603
      %606 = vbcast.lane.b32.xlu0 %v604, 256
      %v607 = vpop.permute.xlu0 %606
      %s609 = sor.u32 256, 8
      %610 = vbcast.lane.b32.xlu0 %v604, %s609
      %v611 = vpop.permute.xlu0 %610
      %v612 = vmul.f32 %v225, %v607
      %v613 = vmul.f32 %v226, %v607
      %v614 = vmul.f32 %v227, %v611
      %v615 = vmul.f32 %v228, %v611
      %616 = vst [vmem:[%s224] sm:$0xff] %v612
      %617 = vst [vmem:[%s224 + $0x8] sm:$0xff] %v613
      %618 = vst [vmem:[%s224 + $0x10] sm:$0xff] %v614
      %619 = vst [vmem:[%s224 + $0x18] sm:$0xff] %v615
      %p620 = scmp.lt.s32.totalorder %s16, 1
      %s621 = scalar_select %p620, %s16, 1
      %s622 = smul.addr %s621, 4
      %s623 = smul.addr %s622, 8
      %s624 = scalar_lea.vmem %s5, %s623
      // Predicated region
      $region41: #{scaled_se_layer.1} parent=39 // pred_check
        %p625 = pneg %p144
      $region42: #{scaled_se_layer.1} parent=39 // pred_check_branch
        %627 = sbr.rel (%p625) target = $region44
      $region43: #{scaled_se_layer.1} parent=39 // pred_region
        _
      $region44: #{scaled_se_layer.1} parent=39 // pred_fallthru
        _
    $region40: #{scaled_se_layer.1} parent=5 // pred_fallthru
      _
    %p628 = scmp.le.s32.totalorder 2, %s11
    // Predicated region
    $region45: #{scaled_se_layer.1} parent=5 // pred_check
      %p629 = pneg %p628
    $region46: #{scaled_se_layer.1} parent=5 // pred_check_branch
      %631 = sbr.rel (%p629) target = $region48
    $region47: #{scaled_se_layer.1} parent=5 // pred_region
      %s632 = ssub.s32 %s11, 2
      // Predicated region
      $region49: #{scaled_se_layer.1} parent=47 // pred_check
        %p633 = pneg %p150
      $region50: #{scaled_se_layer.1} parent=47 // pred_check_branch
        %635 = sbr.rel (%p633) target = $region52
      $region51: #{scaled_se_layer.1} parent=47 // pred_region
        %p636 = scmp.lt.s32.totalorder %s17, 1
        %s637 = scalar_select %p636, %s17, 1
        %s638 = smul.addr %s637, 4
        %s639 = smul.addr %s638, 8
        %s640 = scalar_lea.vmem %s5, %s639
      $region52: #{scaled_se_layer.1} parent=47 // pred_fallthru
        _
    $region48: #{scaled_se_layer.1} parent=5 // pred_fallthru
      _
  $region6: #{scaled_se_layer.1} parent=0 // loop_footer
    %s15 = sadd.s32 1, %s11
  $region7: #{scaled_se_layer.1} parent=0 // loop_footer_branch
    %10 = sbr.rel target = $region3
  $region8: #{scaled_se_layer.1} parent=0 // loop_exit
    _

</llo_original>
